<compile_context>
chip_gen: v7x
topology: tpu7x:2x2x1
jax: 0.10.0
libtpu: 0.0.40
codegen_flags: <defaults>
</compile_context>

<pallas_src>
import functools

import jax
import jax.numpy as jnp
from jax.experimental import pallas as pl
from jax.experimental.pallas import tpu as pltpu

LANE = 128
SUB = 8


def _round_up(x, m):
    return (x + m - 1) // m * m


def _vmem_capacity():
    try:
        return int(pltpu.get_tpu_info().vmem_capacity_bytes)
    except Exception:
        return 64 << 20  # conservative (v7x per-TC physical)


def _auto_tile_l(num_classes, pred_bytes, tgt_bytes_per_px):
    """Flattened pixels per grid step, sized from the VMEM budget (~1/3 capacity)."""
    budget = min(_vmem_capacity(), 128 << 20) // 3
    # double-buffered logits + targets streams + ~4 f32 tile temporaries per class
    per_px = 2 * num_classes * pred_bytes + 2 * tgt_bytes_per_px + 16 * num_classes
    tl = (budget // per_px) // (SUB * LANE) * (SUB * LANE)
    return int(max(SUB * LANE, min(65536, tl)))


def _choose_tiling(hw, tile_l):
    """Return (tile_len, hw_pad). Prefer tile_len | hw so no jnp.pad copy is needed."""
    if hw <= tile_l:
        tl = _round_up(hw, LANE)                    # single tile, full extent
        return tl, tl
    if hw % (SUB * LANE) == 0:
        base = hw // (SUB * LANE)
        best = 0
        for d in range(1, base + 1):
            if base % d == 0 and d * SUB * LANE <= tile_l:
                best = d * SUB * LANE
        if best >= tile_l // 4:                     # avoid degenerate tiny tiles
            return best, hw
    # fallback: padded tiling (pad handled analytically in _finish)
    n_tiles = -(-hw // tile_l)
    tl = _round_up(-(-hw // n_tiles), SUB * LANE)
    return tl, n_tiles * tl


def _to_blocked(x, hw, hw_pad):
    """(N, C, H, W) -> (N, C, hw_pad/128, 128); keeps caller dtype; pads only if needed."""
    n, c = x.shape[0], x.shape[1]
    x = x.reshape(n, c, hw)
    if hw_pad != hw:
        x = jnp.pad(x, ((0, 0), (0, 0), (0, hw_pad - hw)))
    return x.reshape(n, c, hw_pad // LANE, LANE)


def _labels_to_blocked(labels, hw, hw_pad, dtype):
    """(N, H, W) int -> (N, hw_pad/128, 128); pad value -1 matches no class."""
    n = labels.shape[0]
    lbl = labels.reshape(n, hw).astype(dtype)
    if hw_pad != hw:
        lbl = jnp.pad(lbl, ((0, 0), (0, hw_pad - hw)), constant_values=-1)
    return lbl.reshape(n, hw_pad // LANE, LANE)


def _dice_kernel(p_ref, t_ref, out_ref, acc_ref, *, labels_mode, group, acc_s):
    """Grid = (batch [parallel], hw-chunk [parallel], hw-tile j [arbitrary reduction]).

    p_ref:   (C, ts, 128)   logits tile (class axis leading -> pure VPU/EUP softmax)
    t_ref:   (C, ts, 128)   one-hot / soft targets  OR  (ts, 128) int labels
    out_ref: (3, C, 128)    lane-dense per-(batch,chunk) partials, written on last j
    acc_ref: (3, C, acc_s, 128) f32 VMEM accumulator (acc_s == 8 when ts % 8 == 0)
    """
    j = pl.program_id(2)

    @pl.when(j == 0)
    def _init():
        acc_ref[...] = jnp.zeros_like(acc_ref)

    p = p_ref[...].astype(jnp.float32)                       # (C, ts, 128)
    num_classes = p.shape[0]

    # softmax over the class axis: C-way elementwise max/add on the VPU,
    # exp + approximate reciprocal on the EUP (free slot).
    m = jnp.max(p, axis=0, keepdims=True)
    e = jnp.exp(p - m)
    inv = pl.reciprocal(jnp.sum(e, axis=0, keepdims=True), approx=True)
    sm = e * inv                                             # (C, ts, 128)

    if labels_mode:
        lbl = t_ref[...].astype(jnp.int32)                   # (ts, 128)
        cls = jax.lax.broadcasted_iota(jnp.int32, (num_classes,) + lbl.shape, 0)
        t = (cls == lbl[None, :, :]).astype(jnp.float32)     # one-hot built in-kernel
    else:
        t = t_ref[...].astype(jnp.float32)                   # (C, ts, 128)

    def fold(x):                                             # (C, ts, 128) -> (C, acc_s, 128)
        if group == 1:
            return x
        return x.reshape(num_classes, group, acc_s, LANE).sum(axis=1)

    # elementwise (pure VPU) accumulation into a small resident accumulator;
    # the lane reduction is deferred to plain JAX.
    acc_ref[0] += fold(sm * t)        # per-class intersection partials
    acc_ref[1] += fold(sm)            # per-class prediction-sum partials
    acc_ref[2] += fold(t)             # per-class target-sum partials

    @pl.when(j == pl.num_programs(2) - 1)
    def _finalize():
        out_ref[...] = jnp.sum(acc_ref[...], axis=2)         # (3, C, 128), lane-dense


def _dice_partials(p4, t_blocked, labels_mode, tile_l):
    n, c, s, _ = p4.shape
    ts = tile_l // LANE
    n_tiles = s // ts
    assert n_tiles * ts == s

    # v7x: when the batch alone can't feed both TensorCores, split the HW axis too.
    hw_split = 2 if (n % 2 == 1 and n_tiles % 2 == 0) else 1
    tps = n_tiles // hw_split                                 # tiles per split

    acc_s = SUB if ts % SUB == 0 else ts
    group = ts // acc_s

    kern = functools.partial(_dice_kernel, labels_mode=labels_mode,
                             group=group, acc_s=acc_s)

    if labels_mode:
        t_spec = pl.BlockSpec((None, ts, LANE),
                              lambda n_, o, j: (n_, o * tps + j, 0))
    else:
        t_spec = pl.BlockSpec((None, c, ts, LANE),
                              lambda n_, o, j: (n_, 0, o * tps + j, 0))

    vmem_limit = int(min(_vmem_capacity(), 128 << 20) * 3 // 4)

    return pl.pallas_call(
        kern,
        out_shape=jax.ShapeDtypeStruct((n, hw_split, 3, c, LANE), jnp.float32),
        grid=(n, hw_split, tps),
        in_specs=[
            pl.BlockSpec((None, c, ts, LANE),
                         lambda n_, o, j: (n_, 0, o * tps + j, 0)),   # logits
            t_spec,                                                   # targets / labels
        ],
        out_specs=pl.BlockSpec((None, None, 3, c, LANE),
                               lambda n_, o, j: (n_, o, 0, 0, 0)),
        scratch_shapes=[pltpu.VMEM((3, c, acc_s, LANE), jnp.float32)],
        compiler_params=pltpu.CompilerParams(
            dimension_semantics=("parallel", "parallel", "arbitrary"),
            vmem_limit_bytes=vmem_limit),
    )(p4, t_blocked)


def _finish(partials, weight, smooth, pad_pred_correction):
    sums = jnp.sum(partials, axis=(0, 1, 4))                  # (3, C)
    inter, pred, targ = sums[0], sums[1], sums[2]
    # analytic removal of the padded-pixel softmax contribution (exactly 1/C each)
    pred = pred - pad_pred_correction
    dice = (2.0 * inter + smooth) / (pred + targ + smooth)
    if weight is not None:
        dice = dice * jnp.asarray(weight, jnp.float32)
    return 1.0 - jnp.mean(dice)


def multiclass_dice_loss(predictions, targets, weight=None, smooth=1.0,
                         tile_l=None):
    """Module-faithful path: predictions (N,C,H,W) logits, targets (N,C,H,W) one-hot
    (any dtype: f32 / bf16 / int8 / bool; cast to f32 in-kernel)."""
    n, c, h, w = predictions.shape
    hw = h * w
    if tile_l is None:
        tile_l = _auto_tile_l(c, predictions.dtype.itemsize,
                              c * targets.dtype.itemsize)
    tl, hw_pad = _choose_tiling(hw, tile_l)
    p4 = _to_blocked(predictions, hw, hw_pad)
    t4 = _to_blocked(targets, hw, hw_pad)
    partials = _dice_partials(p4, t4, labels_mode=False, tile_l=tl)
    return _finish(partials, weight, smooth, n * (hw_pad - hw) / c)


def multiclass_dice_loss_from_labels(predictions, labels, weight=None,
                                     smooth=1.0, tile_l=None):
    """Fast path: labels (N,H,W) int class indices; one-hot built in-kernel
    (~C x less target HBM traffic than the dense path)."""
    n, c, h, w = predictions.shape
    hw = h * w
    if tile_l is None:
        tile_l = _auto_tile_l(c, predictions.dtype.itemsize, 1)
    tl, hw_pad = _choose_tiling(hw, tile_l)
    ts = tl // LANE
    lbl_dtype = jnp.int8 if (c <= 127 and ts % 32 == 0) else jnp.int32
    p4 = _to_blocked(predictions, hw, hw_pad)
    l3 = _labels_to_blocked(labels, hw, hw_pad, lbl_dtype)
    partials = _dice_partials(p4, l3, labels_mode=True, tile_l=tl)
    return _finish(partials, weight, smooth, n * (hw_pad - hw) / c)


def _reference_loss(predictions, targets, weight=None, smooth=1.0):
    p = jax.nn.softmax(predictions.astype(jnp.float32), axis=1)
    t = targets.astype(jnp.float32)
    inter = jnp.sum(p * t, axis=(0, 2, 3))
    union = jnp.sum(p, axis=(0, 2, 3)) + jnp.sum(t, axis=(0, 2, 3))
    dice = (2.0 * inter + smooth) / (union + smooth)
    if weight is not None:
        dice = dice * jnp.asarray(weight, jnp.float32)
    return 1.0 - jnp.mean(dice)


if __name__ == "__main__":
    key = jax.random.PRNGKey(0)
    k1, k2, k3, k4 = jax.random.split(key, 4)

    # --- small, lane-aligned case (N=2, C=4, 16x16) -------------------------
    N, C, H, W = 2, 4, 16, 16
    predictions = jax.random.normal(k1, (N, C, H, W), dtype=jnp.float32)
    labels = jax.random.randint(k2, (N, H, W), 0, C)
    targets = jnp.transpose(jax.nn.one_hot(labels, C, dtype=jnp.float32),
                            (0, 3, 1, 2))
    weight = jnp.array([0.5, 1.0, 1.5, 2.0], jnp.float32)

    ref = _reference_loss(predictions, targets)
    out = jax.block_until_ready(multiclass_dice_loss(predictions, targets))
    assert jnp.allclose(out, ref, atol=1e-3, rtol=1e-3), (out, ref)

    out_lbl = jax.block_until_ready(
        multiclass_dice_loss_from_labels(predictions, labels))
    assert jnp.allclose(out_lbl, ref, atol=1e-3, rtol=1e-3), (out_lbl, ref)

    ref_w = _reference_loss(predictions, targets, weight=weight)
    out_w = jax.block_until_ready(
        multiclass_dice_loss(predictions, targets, weight=weight))
    assert jnp.allclose(out_w, ref_w, atol=1e-3, rtol=1e-3), (out_w, ref_w)

    # --- non-lane-aligned case (exercises the analytic pad correction) ------
    H2, W2 = 15, 15
    p2 = jax.random.normal(k3, (N, C, H2, W2), dtype=jnp.float32)
    l2 = jax.random.randint(k4, (N, H2, W2), 0, C)
    t2 = jnp.transpose(jax.nn.one_hot(l2, C, dtype=jnp.float32), (0, 3, 1, 2))
    ref2 = _reference_loss(p2, t2)
    out2 = jax.block_until_ready(multiclass_dice_loss(p2, t2))
    assert jnp.allclose(out2, ref2, atol=1e-3, rtol=1e-3), (out2, ref2)

    # --- N=1 multi-tile case (exercises HW-axis parallel split + acc folding) -
    H3, W3 = 64, 64
    p3 = jax.random.normal(k3, (1, C, H3, W3), dtype=jnp.float32)
    l3 = jax.random.randint(k4, (1, H3, W3), 0, C)
    t3 = jnp.transpose(jax.nn.one_hot(l3, C, dtype=jnp.float32), (0, 3, 1, 2))
    ref3 = _reference_loss(p3, t3)
    out3 = jax.block_until_ready(multiclass_dice_loss(p3, t3, tile_l=2048))
    assert jnp.allclose(out3, ref3, atol=1e-3, rtol=1e-3), (out3, ref3)
    out3l = jax.block_until_ready(
        multiclass_dice_loss_from_labels(p3, l3, tile_l=1024))
    assert jnp.allclose(out3l, ref3, atol=1e-3, rtol=1e-3), (out3l, ref3)

    print("KERNEL_OK")
</pallas_src>

<mosaic_0001>
module attributes {stable_mosaic.version = 11 : i64} {
  func.func @_dice_kernel(%arg0: i32, %arg1: i32, %arg2: i32, %arg3: memref<1x4x2x128xf32, #tpu.memory_space<vmem>>, %arg4: memref<1x4x2x128xf32, #tpu.memory_space<vmem>>, %arg5: memref<1x1x3x4x128xf32, #tpu.memory_space<vmem>>, %arg6: memref<3x4x2x128xf32, #tpu.memory_space<vmem>>) attributes {dimension_semantics = [#tpu.dimension_semantics<parallel>, #tpu.dimension_semantics<parallel>, #tpu.dimension_semantics<arbitrary>], iteration_bounds = array<i64: 2, 1, 1>, scalar_prefetch = 0 : i64, scratch_operands = 1 : i64, tpu.core_type = #tpu.core_type<tc>, window_params = [{transform_indices = @transform_0, window_bounds = array<i64: 1, 4, 2, 128>}, {transform_indices = @transform_1, window_bounds = array<i64: 1, 4, 2, 128>}, {transform_indices = @transform_2, window_bounds = array<i64: 1, 1, 3, 4, 128>}]} {
    %c0_i32 = arith.constant 0 : i32
    %0 = arith.cmpi eq, %arg2, %c0_i32 : i32
    %1 = arith.extui %0 : i1 to i32
    %c0_i32_0 = arith.constant 0 : i32
    %2 = arith.cmpi ne, %1, %c0_i32_0 : i32
    scf.if %2 {
      %cst_33 = arith.constant 0.000000e+00 : f32
      %39 = vector.broadcast %cst_33 : f32 to vector<3x4x2x128xf32>
      %c0_34 = arith.constant 0 : index
      %c0_35 = arith.constant 0 : index
      %c0_36 = arith.constant 0 : index
      %c0_37 = arith.constant 0 : index
      %40 = vector.load %arg6[%c0_34, %c0_35, %c0_36, %c0_37] : memref<3x4x2x128xf32, #tpu.memory_space<vmem>>, vector<3x4x2x128xf32>
      tpu.vector_store %arg6[%c0_34, %c0_35, %c0_36, %c0_37], %39 {strides = array<i32>} : memref<3x4x2x128xf32, #tpu.memory_space<vmem>>, vector<3x4x2x128xf32>,
    } else {
    }
    %c0 = arith.constant 0 : index
    %c0_1 = arith.constant 0 : index
    %c0_2 = arith.constant 0 : index
    %c0_3 = arith.constant 0 : index
    %3 = vector.load %arg3[%c0, %c0_1, %c0_2, %c0_3] : memref<1x4x2x128xf32, #tpu.memory_space<vmem>>, vector<1x4x2x128xf32>
    %4 = vector.shape_cast %3 : vector<1x4x2x128xf32> to vector<4x2x128xf32>
    %cst = arith.constant dense<0xFF800000> : vector<2x128xf32>
    %5 = vector.multi_reduction <maximumf>, %4, %cst [0] : vector<4x2x128xf32> to vector<2x128xf32>
    %6 = vector.shape_cast %5 : vector<2x128xf32> to vector<1x2x128xf32>
    %7 = vector.broadcast %6 : vector<1x2x128xf32> to vector<4x2x128xf32>
    %8 = arith.subf %4, %7 : vector<4x2x128xf32>
    %9 = math.exp %8 : vector<4x2x128xf32>
    %cst_4 = arith.constant dense<0.000000e+00> : vector<2x128xf32>
    %10 = vector.multi_reduction <add>, %9, %cst_4 [0] : vector<4x2x128xf32> to vector<2x128xf32>
    %11 = vector.shape_cast %10 : vector<2x128xf32> to vector<1x2x128xf32>
    %12 = tpu.reciprocal %11 {approx = true} : vector<1x2x128xf32> -> vector<1x2x128xf32>
    %13 = vector.broadcast %12 : vector<1x2x128xf32> to vector<4x2x128xf32>
    %14 = arith.mulf %9, %13 : vector<4x2x128xf32>
    %c0_5 = arith.constant 0 : index
    %c0_6 = arith.constant 0 : index
    %c0_7 = arith.constant 0 : index
    %c0_8 = arith.constant 0 : index
    %15 = vector.load %arg4[%c0_5, %c0_6, %c0_7, %c0_8] : memref<1x4x2x128xf32, #tpu.memory_space<vmem>>, vector<1x4x2x128xf32>
    %16 = vector.shape_cast %15 : vector<1x4x2x128xf32> to vector<4x2x128xf32>
    %c0_9 = arith.constant 0 : index
    %c0_10 = arith.constant 0 : index
    %c0_11 = arith.constant 0 : index
    %c0_12 = arith.constant 0 : index
    %17 = vector.load %arg6[%c0_9, %c0_10, %c0_11, %c0_12] : memref<3x4x2x128xf32, #tpu.memory_space<vmem>>, vector<1x4x2x128xf32>
    %18 = vector.shape_cast %17 : vector<1x4x2x128xf32> to vector<4x2x128xf32>
    %19 = arith.mulf %14, %16 : vector<4x2x128xf32>
    %20 = arith.addf %18, %19 : vector<4x2x128xf32>
    %c0_13 = arith.constant 0 : index
    %c0_14 = arith.constant 0 : index
    %c0_15 = arith.constant 0 : index
    %c0_16 = arith.constant 0 : index
    %21 = vector.load %arg6[%c0_13, %c0_14, %c0_15, %c0_16] : memref<3x4x2x128xf32, #tpu.memory_space<vmem>>, vector<1x4x2x128xf32>
    %22 = vector.shape_cast %21 : vector<1x4x2x128xf32> to vector<4x2x128xf32>
    %23 = vector.shape_cast %20 : vector<4x2x128xf32> to vector<1x4x2x128xf32>
    tpu.vector_store %arg6[%c0_13, %c0_14, %c0_15, %c0_16], %23 {strides = array<i32>} : memref<3x4x2x128xf32, #tpu.memory_space<vmem>>, vector<1x4x2x128xf32>,
    %c1 = arith.constant 1 : index
    %c0_17 = arith.constant 0 : index
    %c0_18 = arith.constant 0 : index
    %c0_19 = arith.constant 0 : index
    %24 = vector.load %arg6[%c1, %c0_17, %c0_18, %c0_19] : memref<3x4x2x128xf32, #tpu.memory_space<vmem>>, vector<1x4x2x128xf32>
    %25 = vector.shape_cast %24 : vector<1x4x2x128xf32> to vector<4x2x128xf32>
    %26 = arith.addf %25, %14 : vector<4x2x128xf32>
    %c1_20 = arith.constant 1 : index
    %c0_21 = arith.constant 0 : index
    %c0_22 = arith.constant 0 : index
    %c0_23 = arith.constant 0 : index
    %27 = vector.load %arg6[%c1_20, %c0_21, %c0_22, %c0_23] : memref<3x4x2x128xf32, #tpu.memory_space<vmem>>, vector<1x4x2x128xf32>
    %28 = vector.shape_cast %27 : vector<1x4x2x128xf32> to vector<4x2x128xf32>
    %29 = vector.shape_cast %26 : vector<4x2x128xf32> to vector<1x4x2x128xf32>
    tpu.vector_store %arg6[%c1_20, %c0_21, %c0_22, %c0_23], %29 {strides = array<i32>} : memref<3x4x2x128xf32, #tpu.memory_space<vmem>>, vector<1x4x2x128xf32>,
    %c2 = arith.constant 2 : index
    %c0_24 = arith.constant 0 : index
    %c0_25 = arith.constant 0 : index
    %c0_26 = arith.constant 0 : index
    %30 = vector.load %arg6[%c2, %c0_24, %c0_25, %c0_26] : memref<3x4x2x128xf32, #tpu.memory_space<vmem>>, vector<1x4x2x128xf32>
    %31 = vector.shape_cast %30 : vector<1x4x2x128xf32> to vector<4x2x128xf32>
    %32 = arith.addf %31, %16 : vector<4x2x128xf32>
    %c2_27 = arith.constant 2 : index
    %c0_28 = arith.constant 0 : index
    %c0_29 = arith.constant 0 : index
    %c0_30 = arith.constant 0 : index
    %33 = vector.load %arg6[%c2_27, %c0_28, %c0_29, %c0_30] : memref<3x4x2x128xf32, #tpu.memory_space<vmem>>, vector<1x4x2x128xf32>
    %34 = vector.shape_cast %33 : vector<1x4x2x128xf32> to vector<4x2x128xf32>
    %35 = vector.shape_cast %32 : vector<4x2x128xf32> to vector<1x4x2x128xf32>
    tpu.vector_store %arg6[%c2_27, %c0_28, %c0_29, %c0_30], %35 {strides = array<i32>} : memref<3x4x2x128xf32, #tpu.memory_space<vmem>>, vector<1x4x2x128xf32>,
    %c0_i32_31 = arith.constant 0 : i32
    %36 = arith.cmpi eq, %arg2, %c0_i32_31 : i32
    %37 = arith.extui %36 : i1 to i32
    %c0_i32_32 = arith.constant 0 : i32
    %38 = arith.cmpi ne, %37, %c0_i32_32 : i32
    scf.if %38 {
      %c0_33 = arith.constant 0 : index
      %c0_34 = arith.constant 0 : index
      %c0_35 = arith.constant 0 : index
      %c0_36 = arith.constant 0 : index
      %39 = vector.load %arg6[%c0_33, %c0_34, %c0_35, %c0_36] : memref<3x4x2x128xf32, #tpu.memory_space<vmem>>, vector<3x4x2x128xf32>
      %cst_37 = arith.constant dense<0.000000e+00> : vector<3x4x128xf32>
      %40 = vector.multi_reduction <add>, %39, %cst_37 [2] : vector<3x4x2x128xf32> to vector<3x4x128xf32>
      %c0_38 = arith.constant 0 : index
      %c0_39 = arith.constant 0 : index
      %c0_40 = arith.constant 0 : index
      %c0_41 = arith.constant 0 : index
      %c0_42 = arith.constant 0 : index
      %41 = vector.load %arg5[%c0_38, %c0_39, %c0_40, %c0_41, %c0_42] : memref<1x1x3x4x128xf32, #tpu.memory_space<vmem>>, vector<1x1x3x4x128xf32>
      %42 = vector.shape_cast %41 : vector<1x1x3x4x128xf32> to vector<3x4x128xf32>
      %43 = vector.shape_cast %40 : vector<3x4x128xf32> to vector<1x1x3x4x128xf32>
      tpu.vector_store %arg5[%c0_38, %c0_39, %c0_40, %c0_41, %c0_42], %43 {strides = array<i32>} : memref<1x1x3x4x128xf32, #tpu.memory_space<vmem>>, vector<1x1x3x4x128xf32>,
    } else {
    }
    return
  }
  func.func @transform_0(%arg0: i32, %arg1: i32, %arg2: i32) -> (i32, i32, i32, i32) {
    %c1_i32 = arith.constant 1 : i32
    %0 = arith.muli %arg1, %c1_i32 : i32
    %1 = arith.addi %0, %arg2 : i32
    %c0_i32 = arith.constant 0 : i32
    %c0_i32_0 = arith.constant 0 : i32
    %c0_i32_1 = arith.constant 0 : i32
    return %arg0, %c0_i32, %1, %c0_i32_0 : i32, i32, i32, i32
  }
  func.func @transform_1(%arg0: i32, %arg1: i32, %arg2: i32) -> (i32, i32, i32, i32) {
    %c1_i32 = arith.constant 1 : i32
    %0 = arith.muli %arg1, %c1_i32 : i32
    %1 = arith.addi %0, %arg2 : i32
    %c0_i32 = arith.constant 0 : i32
    %c0_i32_0 = arith.constant 0 : i32
    %c0_i32_1 = arith.constant 0 : i32
    return %arg0, %c0_i32, %1, %c0_i32_0 : i32, i32, i32, i32
  }
  func.func @transform_2(%arg0: i32, %arg1: i32, %arg2: i32) -> (i32, i32, i32, i32, i32) {
    %c0_i32 = arith.constant 0 : i32
    %c0_i32_0 = arith.constant 0 : i32
    %c0_i32_1 = arith.constant 0 : i32
    %c0_i32_2 = arith.constant 0 : i32
    return %arg0, %arg1, %c0_i32, %c0_i32_0, %c0_i32_1 : i32, i32, i32, i32, i32
  }
}

</mosaic_0001>

<llo_original>
// kernel: tpu_custom_call.1
$region0: #{tpu_custom_call.1}
  #allocation0 [shape = 'u32[]', space=smem, size = 0x4, offset = 0x4, fixed_abs, tag = 'smem constant byte address 0x4 - core index']
  #allocation1 [shape = 'u32[144,128]{1,0:T(1,128)}', space=vmem, size = 0x12000, scoped, tag = 'internal scratch']
  #allocation2 [shape = 'f32[3,4,2,128]{3,2,1,0:T(2,128)}', space=vmem, size = 0x3000, scoped, tag = 'scratch operand']
  %s0 = inlined_call_operand.hbm [shape: f32[2,4,2,128], index: 0, kind: input, shape index: {}]
  %s1 = inlined_call_operand.hbm [shape: f32[2,4,2,128], index: 1, kind: input, shape index: {}]
  %s2 = inlined_call_operand.hbm [shape: f32[2,1,3,4,128], index: 2, kind: output, shape index: {}]
  %s3 = sld [smem:[#allocation0]]
  $region57: #{tpu_custom_call.1} parent=0
    _
  %s5 = ssub.s32 1, %s3
  %s6 = scalar_select 0, %s5, %s3
  $region1: #{tpu_custom_call.1} parent=0
    #allocation3 [shape = 'u8[8192]{0}', space=vmem, size = 0x2000, scoped, tag = 'input window, operand 0']
    #allocation4 [shape = 's32[2]{0}', space=sflag, size = 0x8, scoped, tag = 'scoped memory for tpu_custom_call.1']
    #allocation5 [shape = 's32[2]{0}', space=sflag, size = 0x8, scoped, tag = 'scoped memory for tpu_custom_call.1']
    #allocation6 [shape = 'u8[8192]{0}', space=vmem, size = 0x2000, scoped, tag = 'input window, operand 1']
    #allocation7 [shape = 's32[2]{0}', space=sflag, size = 0x8, scoped, tag = 'scoped memory for tpu_custom_call.1']
    #allocation8 [shape = 'u8[12288]{0}', space=vmem, size = 0x3000, scoped, tag = 'output window, operand 0']
    %7 = vsyncpa [#allocation4], 0
    %s8 = scalar_lea.sflag [#allocation4], 1
    %9 = vsyncpa %s8, 0
    %10 = vsyncpa [#allocation7], 0
    %s11 = scalar_lea.sflag [#allocation7], 1
    %12 = vsyncpa %s11, 0
    %13 = vsyncpa [#allocation5], 0
    %s14 = scalar_lea.sflag [#allocation5], 1
    %15 = vsyncpa %s14, 0
    loop: start=0, step=1, limit=4
    $region2: #{tpu_custom_call.1} parent=1 // loop_pre_header
      _
    $region3: #{tpu_custom_call.1} parent=1 // loop_header
      %s17 = sphi 0, %s21
      %p18 = scmp.ge.s32.totalorder %s17, 4
      %s24 = sphi 0, %s43
      %s25 = sphi 0, %s39
      %s26 = sphi 0, %s35
      %s27 = sphi 0, %s24
      %s28 = sphi 0, %s25
      %s29 = sphi 0, %s26
      %s30 = sphi 0, %s27
      %s31 = sphi 0, %s28
      %s32 = sphi 0, %s29
      %s50 = sphi 0, %s52
      %s53 = sphi 0, %s50
      %s54 = sphi 0, %s53
      %s70 = sphi 0, %s54
      %s80 = sphi 0, %s82
      %s83 = sphi 0, %s80
      %s84 = sphi 0, %s83
      %s100 = sphi 0, %s84
      %s108 = sphi 0, %s110
      %s111 = sphi 0, %s108
      %s112 = sphi 0, %s111
      %s128 = sphi 0, %s112
    $region4: #{tpu_custom_call.1} parent=1 // loop_header_branch
      %20 = sbr.rel (%p18) target = $region8
    $region5: #{tpu_custom_call.1} parent=1 // loop_body
      %s22 = ssub.s32 %s17, 1
      %s23 = ssub.s32 %s17, 2
      %s33 = sadd.s32 1, %s26
      %p34 = scmp.ge.s32.totalorder %s33, 1
      %s35 = scalar_select %p34, 0, %s33
      %s36 = sadd.s32 1, %s25
      %s37 = scalar_select %p34, %s36, %s25
      %p38 = scmp.ge.s32.totalorder %s37, 1
      %s39 = scalar_select %p38, 0, %s37
      %s40 = sadd.s32 1, %s24
      %s41 = scalar_select %p38, %s40, %s24
      %p42 = scmp.ge.s32.totalorder %s41, 2
      %s43 = scalar_select %p42, 0, %s41
      %s44 = sadd.s32 %s25, %s26
      %s45 = sadd.s32 %s39, %s35
      %s46 = ssub.s32 %s24, %s43
      %s47 = ssub.s32 %s44, %s45
      %s48 = sor.u32 %s46, %s47
      %p49 = scmp.eq.s32.totalorder %s48, 0
      %s51 = sadd.s32 %s50, 1
      %s52 = scalar_select %p49, %s50, %s51
      %p55 = pneg %p49
      %p56 = scmp.eq.s32.totalorder %s17, 1
      %p57 = por %p55, %p56
      %p58 = scmp.ne.s32.totalorder %s50, %s53
      %p59 = scmp.eq.s32.totalorder %s17, 0
      %p60 = por %p58, %p59
      %p61 = scmp.ne.s32.totalorder %s50, %s53
      %p62 = scmp.eq.s32.totalorder %s22, 1
      %p63 = por %p61, %p62
      %p64 = scmp.ne.s32.totalorder %s53, %s54
      %p65 = scmp.eq.s32.totalorder %s22, 0
      %p66 = por %p64, %p65
      %p67 = scmp.ne.s32.totalorder %s53, %s54
      %p68 = scmp.eq.s32.totalorder %s23, 1
      %p69 = por %p67, %p68
      %p71 = scmp.ne.s32.totalorder %s54, %s70
      %p72 = scmp.eq.s32.totalorder %s23, 0
      %p73 = por %p71, %p72
      %s74 = sadd.s32 %s25, %s26
      %s75 = sadd.s32 %s39, %s35
      %s76 = ssub.s32 %s24, %s43
      %s77 = ssub.s32 %s74, %s75
      %s78 = sor.u32 %s76, %s77
      %p79 = scmp.eq.s32.totalorder %s78, 0
      %s81 = sadd.s32 %s80, 1
      %s82 = scalar_select %p79, %s80, %s81
      %p85 = pneg %p79
      %p86 = scmp.eq.s32.totalorder %s17, 1
      %p87 = por %p85, %p86
      %p88 = scmp.ne.s32.totalorder %s80, %s83
      %p89 = scmp.eq.s32.totalorder %s17, 0
      %p90 = por %p88, %p89
      %p91 = scmp.ne.s32.totalorder %s80, %s83
      %p92 = scmp.eq.s32.totalorder %s22, 1
      %p93 = por %p91, %p92
      %p94 = scmp.ne.s32.totalorder %s83, %s84
      %p95 = scmp.eq.s32.totalorder %s22, 0
      %p96 = por %p94, %p95
      %p97 = scmp.ne.s32.totalorder %s83, %s84
      %p98 = scmp.eq.s32.totalorder %s23, 1
      %p99 = por %p97, %p98
      %p101 = scmp.ne.s32.totalorder %s84, %s100
      %p102 = scmp.eq.s32.totalorder %s23, 0
      %p103 = por %p101, %p102
      %s104 = ssub.s32 %s24, %s43
      %s105 = ssub.s32 %s25, %s39
      %s106 = sor.u32 %s104, %s105
      %p107 = scmp.eq.s32.totalorder %s106, 0
      %s109 = sadd.s32 %s108, 1
      %s110 = scalar_select %p107, %s108, %s109
      %p113 = pneg %p107
      %p114 = scmp.eq.s32.totalorder %s17, 1
      %p115 = por %p113, %p114
      %p116 = scmp.ne.s32.totalorder %s108, %s111
      %p117 = scmp.eq.s32.totalorder %s17, 0
      %p118 = por %p116, %p117
      %p119 = scmp.ne.s32.totalorder %s108, %s111
      %p120 = scmp.eq.s32.totalorder %s22, 1
      %p121 = por %p119, %p120
      %p122 = scmp.ne.s32.totalorder %s111, %s112
      %p123 = scmp.eq.s32.totalorder %s22, 0
      %p124 = por %p122, %p123
      %p125 = scmp.ne.s32.totalorder %s111, %s112
      %p126 = scmp.eq.s32.totalorder %s23, 1
      %p127 = por %p125, %p126
      %p129 = scmp.ne.s32.totalorder %s112, %s128
      %p130 = scmp.eq.s32.totalorder %s23, 0
      %p131 = por %p129, %p130
      %p132 = scmp.le.s32.totalorder 1, %s17
      %p133 = scmp.lt.s32.totalorder %s17, 3
      %p134 = pnand %p132, %p133
      %p135 = pneg %p134
      // Predicated region
      $region9: #{tpu_custom_call.1} parent=5 // pred_check
        _
      $region10: #{tpu_custom_call.1} parent=5 // pred_check_branch
        %137 = sbr.rel (%p134) target = $region12
      $region11: #{tpu_custom_call.1} parent=5 // pred_region
        %s138 = ssub.s32 %s17, 1
      $region12: #{tpu_custom_call.1} parent=5 // pred_fallthru
        _
      %p139 = scmp.lt.s32.totalorder %s17, 2
      // Predicated region
      $region13: #{tpu_custom_call.1} parent=5 // pred_check
        %p140 = pneg %p139
      $region14: #{tpu_custom_call.1} parent=5 // pred_check_branch
        %142 = sbr.rel (%p140) target = $region16
      $region15: #{tpu_custom_call.1} parent=5 // pred_region
        // Predicated region
        $region17: #{tpu_custom_call.1} parent=15 // pred_check
          %p143 = pneg %p60
        $region18: #{tpu_custom_call.1} parent=15 // pred_check_branch
          %145 = sbr.rel (%p143) target = $region20
        $region19: #{tpu_custom_call.1} parent=15 // pred_region
          %s146 = sand.u32 %s50, 1
          %s147 = scalar_lea.sflag [#allocation4], %s146
          %s148 = sand.u32 %s50, 1
          %s149 = smul.addr %s148, 8
          %s150 = scalar_lea.vmem [#allocation3], %s149
          %s151 = sadd.s32 %s25, %s26
          %s153 = ssub.s32 128, 128
          %154 = vsyncadd %s147, %s153
          %s155 = smul.addr %s24, 4
          %s156 = sadd.s32 %s151, %s155
          %s157 = smul.addr %s156, 32
          %s158 = scalar_lea.hbm %s0, %s157
          %s159 = sshll.u32 %s150, 4
          %s160 = int_to_ptr.vmem [resolvable:$true] %s159
          %165 = dma.hbm_to_vmem [thread:$0]  %s158, 128, %s160, %s147, 32, 32, 2
        $region20: #{tpu_custom_call.1} parent=15 // pred_fallthru
          _
        // Predicated region
        $region21: #{tpu_custom_call.1} parent=15 // pred_check
          %p166 = pneg %p90
        $region22: #{tpu_custom_call.1} parent=15 // pred_check_branch
          %168 = sbr.rel (%p166) target = $region24
        $region23: #{tpu_custom_call.1} parent=15 // pred_region
          %s169 = sand.u32 %s80, 1
          %s170 = scalar_lea.sflag [#allocation7], %s169
          %s171 = sand.u32 %s80, 1
          %s172 = smul.addr %s171, 8
          %s173 = scalar_lea.vmem [#allocation6], %s172
          %s174 = sadd.s32 %s25, %s26
          %s176 = ssub.s32 128, 128
          %177 = vsyncadd %s170, %s176
          %s178 = smul.addr %s24, 4
          %s179 = sadd.s32 %s174, %s178
          %s180 = smul.addr %s179, 32
          %s181 = scalar_lea.hbm %s1, %s180
          %s182 = sshll.u32 %s173, 4
          %s183 = int_to_ptr.vmem [resolvable:$true] %s182
          %188 = dma.hbm_to_vmem [thread:$0]  %s181, 128, %s183, %s170, 32, 32, 2
        $region24: #{tpu_custom_call.1} parent=15 // pred_fallthru
          _
      $region16: #{tpu_custom_call.1} parent=5 // pred_fallthru
        _
      %p189 = scmp.le.s32.totalorder 1, %s17
      %p190 = scmp.lt.s32.totalorder %s17, 3
      %p191 = pnand %p189, %p190
      %p192 = pneg %p191
      // Predicated region
      $region25: #{tpu_custom_call.1} parent=5 // pred_check
        _
      $region26: #{tpu_custom_call.1} parent=5 // pred_check_branch
        %194 = sbr.rel (%p191) target = $region28
      $region27: #{tpu_custom_call.1} parent=5 // pred_region
        %s195 = ssub.s32 %s17, 1
        %s196 = sand.u32 %s53, 1
        %s197 = scalar_lea.sflag [#allocation4], %s196
        %s198 = sand.u32 %s53, 1
        %s199 = smul.addr %s198, 8
        %s200 = scalar_lea.vmem [#allocation3], %s199
        // Predicated region
        $region29: #{tpu_custom_call.1} parent=27 // pred_check
          %p201 = pneg %p66
        $region30: #{tpu_custom_call.1} parent=27 // pred_check_branch
          %203 = sbr.rel (%p201) target = $region32
        $region31: #{tpu_custom_call.1} parent=27 // pred_region
          %204 = dma.done %s197, 128
        $region32: #{tpu_custom_call.1} parent=27 // pred_fallthru
          _
        %s205 = sand.u32 %s83, 1
        %s206 = scalar_lea.sflag [#allocation7], %s205
        %s207 = sand.u32 %s83, 1
        %s208 = smul.addr %s207, 8
        %s209 = scalar_lea.vmem [#allocation6], %s208
        // Predicated region
        $region33: #{tpu_custom_call.1} parent=27 // pred_check
          %p210 = pneg %p96
        $region34: #{tpu_custom_call.1} parent=27 // pred_check_branch
          %212 = sbr.rel (%p210) target = $region36
        $region35: #{tpu_custom_call.1} parent=27 // pred_region
          %213 = dma.done %s206, 128
        $region36: #{tpu_custom_call.1} parent=27 // pred_fallthru
          _
        %s214 = sand.u32 %s53, 1
        %s215 = scalar_lea.sflag [#allocation4], %s214
        %s216 = sand.u32 %s53, 1
        %s217 = smul.addr %s216, 8
        %s218 = scalar_lea.vmem [#allocation3], %s217
        %p219 = pneg %p66
        %p220 = pneg %p63
        %s221 = sand.u32 %s83, 1
        %s222 = scalar_lea.sflag [#allocation7], %s221
        %s223 = sand.u32 %s83, 1
        %s224 = smul.addr %s223, 8
        %s225 = scalar_lea.vmem [#allocation6], %s224
        %p226 = pneg %p96
        %p227 = pneg %p93
        %p228 = pneg %p124
        %p229 = pneg %p121
        %s230 = sand.u32 %s111, 1
        %s231 = scalar_lea.sflag [#allocation5], %s230
        %s232 = sand.u32 %s111, 1
        %s233 = smul.addr %s232, 12
        %s234 = scalar_lea.vmem [#allocation8], %s233
        %s235 = sadd.s32 %s28, %s29
        %s236 = sadd.s32 %s28, %s29
        %p237 = scmp.eq.s32.totalorder %s29, 0
        // Predicated region
        $region37: #{tpu_custom_call.1} parent=27 // pred_check
          %p238 = pneg %p237
        $region38: #{tpu_custom_call.1} parent=27 // pred_check_branch
          %240 = sbr.rel (%p238) target = $region40
        $region39: #{tpu_custom_call.1} parent=27 // pred_region
          %241 = vst [vmem:[#allocation2] sm:$0x3] 0.0
          %242 = vst [vmem:[#allocation2 + $0x2] sm:$0x3] 0.0
          %243 = vst [vmem:[#allocation2 + $0x4] sm:$0x3] 0.0
          %244 = vst [vmem:[#allocation2 + $0x6] sm:$0x3] 0.0
          %245 = vst [vmem:[#allocation2 + $0x8] sm:$0x3] 0.0
          %246 = vst [vmem:[#allocation2 + $0xa] sm:$0x3] 0.0
          %247 = vst [vmem:[#allocation2 + $0xc] sm:$0x3] 0.0
          %248 = vst [vmem:[#allocation2 + $0xe] sm:$0x3] 0.0
          %249 = vst [vmem:[#allocation2 + $0x10] sm:$0x3] 0.0
          %250 = vst [vmem:[#allocation2 + $0x12] sm:$0x3] 0.0
          %251 = vst [vmem:[#allocation2 + $0x14] sm:$0x3] 0.0
          %252 = vst [vmem:[#allocation2 + $0x16] sm:$0x3] 0.0
        $region40: #{tpu_custom_call.1} parent=27 // pred_fallthru
          _
        %v253 = vld [vmem:[%s200] sm:$0x3]
        %v254 = vld [vmem:[%s200 + $0x2] sm:$0x3]
        %v255 = vld [vmem:[%s200 + $0x4] sm:$0x3]
        %v256 = vld [vmem:[%s200 + $0x6] sm:$0x3]
        %vm257 = vcmask 1041408
        %v258 = vsel %vm257, %v253, -inf
        %v259 = vsel %vm257, %v254, -inf
        %v260 = vsel %vm257, %v255, -inf
        %v261 = vsel %vm257, %v256, -inf
        %v262 = vmax.f32 %v258, %v259
        %v263 = vmax.f32 %v260, %v261
        %v264 = vmax.f32 %v262, %v263
        %v265 = vsub.f32 %v253, %v264
        %v266 = vsub.f32 %v254, %v264
        %v267 = vsub.f32 %v255, %v264
        %v268 = vsub.f32 %v256, %v264
        %v269 = vmul.f32 %v265, 1.442695
        %v270 = vpow.pop %v269
        %v271 = vmul.f32 %v266, 1.442695
        %v272 = vpow.pop %v271
        %v273 = vmul.f32 %v267, 1.442695
        %v274 = vpow.pop %v273
        %v275 = vmul.f32 %v268, 1.442695
        %v276 = vpow.pop %v275
        %v277 = vsel %vm257, %v270, 0.0
        %v278 = vsel %vm257, %v272, 0.0
        %v279 = vadd.f32 %v277, %v278
        %v280 = vsel %vm257, %v274, 0.0
        %v281 = vadd.f32 %v279, %v280
        %v282 = vsel %vm257, %v276, 0.0
        %v283 = vadd.f32 %v281, %v282
        %v284 = vrcp.pop %v283
        %v285 = vmul.f32 %v270, %v284
        %v286 = vmul.f32 %v272, %v284
        %v287 = vmul.f32 %v274, %v284
        %v288 = vmul.f32 %v276, %v284
        %v289 = vld [vmem:[%s209] sm:$0x3]
        %v290 = vld [vmem:[%s209 + $0x2] sm:$0x3]
        %v291 = vld [vmem:[%s209 + $0x4] sm:$0x3]
        %v292 = vld [vmem:[%s209 + $0x6] sm:$0x3]
        %v293 = vld [vmem:[#allocation2] sm:$0x3]
        %v294 = vld [vmem:[#allocation2 + $0x2] sm:$0x3]
        %v295 = vld [vmem:[#allocation2 + $0x4] sm:$0x3]
        %v296 = vld [vmem:[#allocation2 + $0x6] sm:$0x3]
        %v297 = vmul.f32 %v285, %v289
        %v298 = vmul.f32 %v286, %v290
        %v299 = vmul.f32 %v287, %v291
        %v300 = vmul.f32 %v288, %v292
        %v301 = vadd.f32 %v293, %v297
        %v302 = vadd.f32 %v294, %v298
        %v303 = vadd.f32 %v295, %v299
        %v304 = vadd.f32 %v296, %v300
        %305 = vst [vmem:[#allocation2] sm:$0x3] %v301
        %306 = vst [vmem:[#allocation2 + $0x2] sm:$0x3] %v302
        %307 = vst [vmem:[#allocation2 + $0x4] sm:$0x3] %v303
        %308 = vst [vmem:[#allocation2 + $0x6] sm:$0x3] %v304
        %s309 = scalar_lea.vmem [#allocation2], 8
        %v310 = vld [vmem:[%s309] sm:$0x3]
        %v311 = vld [vmem:[%s309 + $0x2] sm:$0x3]
        %v312 = vld [vmem:[%s309 + $0x4] sm:$0x3]
        %v313 = vld [vmem:[%s309 + $0x6] sm:$0x3]
        %v314 = vadd.f32 %v310, %v285
        %v315 = vadd.f32 %v311, %v286
        %v316 = vadd.f32 %v312, %v287
        %v317 = vadd.f32 %v313, %v288
        %318 = vst [vmem:[%s309] sm:$0x3] %v314
        %319 = vst [vmem:[%s309 + $0x2] sm:$0x3] %v315
        %320 = vst [vmem:[%s309 + $0x4] sm:$0x3] %v316
        %321 = vst [vmem:[%s309 + $0x6] sm:$0x3] %v317
        %s322 = scalar_lea.vmem [#allocation2], 16
        %v323 = vld [vmem:[%s322] sm:$0x3]
        %v324 = vld [vmem:[%s322 + $0x2] sm:$0x3]
        %v325 = vld [vmem:[%s322 + $0x4] sm:$0x3]
        %v326 = vld [vmem:[%s322 + $0x6] sm:$0x3]
        %v327 = vadd.f32 %v323, %v289
        %v328 = vadd.f32 %v324, %v290
        %v329 = vadd.f32 %v325, %v291
        %v330 = vadd.f32 %v326, %v292
        %331 = vst [vmem:[%s322] sm:$0x3] %v327
        %332 = vst [vmem:[%s322 + $0x2] sm:$0x3] %v328
        %333 = vst [vmem:[%s322 + $0x4] sm:$0x3] %v329
        %334 = vst [vmem:[%s322 + $0x6] sm:$0x3] %v330
        // Predicated region
        $region41: #{tpu_custom_call.1} parent=27 // pred_check
          %p335 = pneg %p237
        $region42: #{tpu_custom_call.1} parent=27 // pred_check_branch
          %337 = sbr.rel (%p335) target = $region44
        $region43: #{tpu_custom_call.1} parent=27 // pred_region
          %v338 = vld [vmem:[#allocation2] sm:$0x3]
          %v339 = vld [vmem:[#allocation2 + $0x2] sm:$0x3]
          %v340 = vld [vmem:[#allocation2 + $0x4] sm:$0x3]
          %v341 = vld [vmem:[#allocation2 + $0x6] sm:$0x3]
          %v342 = vld [vmem:[#allocation2 + $0x8] sm:$0x3]
          %v343 = vld [vmem:[#allocation2 + $0xa] sm:$0x3]
          %v344 = vld [vmem:[#allocation2 + $0xc] sm:$0x3]
          %v345 = vld [vmem:[#allocation2 + $0xe] sm:$0x3]
          %v346 = vld [vmem:[#allocation2 + $0x10] sm:$0x3]
          %v347 = vld [vmem:[#allocation2 + $0x12] sm:$0x3]
          %v348 = vld [vmem:[#allocation2 + $0x14] sm:$0x3]
          %v349 = vld [vmem:[#allocation2 + $0x16] sm:$0x3]
          %v350 = vsel %vm257, %v338, 0.0
          %v351 = vrot.slane %v350, 4
          %v352 = vadd.f32 %v350, %v351
          %v353 = vrot.slane %v352, 2
          %v354 = vadd.f32 %v352, %v353
          %v355 = vrot.slane %v354, 1
          %v356 = vadd.f32 %v354, %v355
          %v357 = vsel %vm257, %v339, 0.0
          %v358 = vrot.slane %v357, 4
          %v359 = vadd.f32 %v357, %v358
          %v360 = vrot.slane %v359, 2
          %v361 = vadd.f32 %v359, %v360
          %v362 = vrot.slane %v361, 1
          %v363 = vadd.f32 %v361, %v362
          %v364 = vsel %vm257, %v340, 0.0
          %v365 = vrot.slane %v364, 4
          %v366 = vadd.f32 %v364, %v365
          %v367 = vrot.slane %v366, 2
          %v368 = vadd.f32 %v366, %v367
          %v369 = vrot.slane %v368, 1
          %v370 = vadd.f32 %v368, %v369
          %v371 = vsel %vm257, %v341, 0.0
          %v372 = vrot.slane %v371, 4
          %v373 = vadd.f32 %v371, %v372
          %v374 = vrot.slane %v373, 2
          %v375 = vadd.f32 %v373, %v374
          %v376 = vrot.slane %v375, 1
          %v377 = vadd.f32 %v375, %v376
          %v378 = vsel %vm257, %v342, 0.0
          %v379 = vrot.slane %v378, 4
          %v380 = vadd.f32 %v378, %v379
          %v381 = vrot.slane %v380, 2
          %v382 = vadd.f32 %v380, %v381
          %v383 = vrot.slane %v382, 1
          %v384 = vadd.f32 %v382, %v383
          %v385 = vsel %vm257, %v343, 0.0
          %v386 = vrot.slane %v385, 4
          %v387 = vadd.f32 %v385, %v386
          %v388 = vrot.slane %v387, 2
          %v389 = vadd.f32 %v387, %v388
          %v390 = vrot.slane %v389, 1
          %v391 = vadd.f32 %v389, %v390
          %v392 = vsel %vm257, %v344, 0.0
          %v393 = vrot.slane %v392, 4
          %v394 = vadd.f32 %v392, %v393
          %v395 = vrot.slane %v394, 2
          %v396 = vadd.f32 %v394, %v395
          %v397 = vrot.slane %v396, 1
          %v398 = vadd.f32 %v396, %v397
          %v399 = vsel %vm257, %v345, 0.0
          %v400 = vrot.slane %v399, 4
          %v401 = vadd.f32 %v399, %v400
          %v402 = vrot.slane %v401, 2
          %v403 = vadd.f32 %v401, %v402
          %v404 = vrot.slane %v403, 1
          %v405 = vadd.f32 %v403, %v404
          %v406 = vsel %vm257, %v346, 0.0
          %v407 = vrot.slane %v406, 4
          %v408 = vadd.f32 %v406, %v407
          %v409 = vrot.slane %v408, 2
          %v410 = vadd.f32 %v408, %v409
          %v411 = vrot.slane %v410, 1
          %v412 = vadd.f32 %v410, %v411
          %v413 = vsel %vm257, %v347, 0.0
          %v414 = vrot.slane %v413, 4
          %v415 = vadd.f32 %v413, %v414
          %v416 = vrot.slane %v415, 2
          %v417 = vadd.f32 %v415, %v416
          %v418 = vrot.slane %v417, 1
          %v419 = vadd.f32 %v417, %v418
          %v420 = vsel %vm257, %v348, 0.0
          %v421 = vrot.slane %v420, 4
          %v422 = vadd.f32 %v420, %v421
          %v423 = vrot.slane %v422, 2
          %v424 = vadd.f32 %v422, %v423
          %v425 = vrot.slane %v424, 1
          %v426 = vadd.f32 %v424, %v425
          %v427 = vsel %vm257, %v349, 0.0
          %v428 = vrot.slane %v427, 4
          %v429 = vadd.f32 %v427, %v428
          %v430 = vrot.slane %v429, 2
          %v431 = vadd.f32 %v429, %v430
          %v432 = vrot.slane %v431, 1
          %v433 = vadd.f32 %v431, %v432
          %vm446 = vcmask 1041409
          %v447 = vsel %vm446, %v363, %v356
          %vm448 = vcmask 1042434
          %v449 = vsel %vm448, %v370, %v447
          %vm450 = vcmask 1043459
          %v451 = vsel %vm450, %v377, %v449
          %v452 = vsel %vm446, %v391, %v384
          %v453 = vsel %vm448, %v398, %v452
          %v454 = vsel %vm450, %v405, %v453
          %v455 = vsel %vm446, %v419, %v412
          %v456 = vsel %vm448, %v426, %v455
          %v457 = vsel %vm450, %v433, %v456
          %461 = vst [vmem:[%s234] sm:$0xf] %v451
          %462 = vst [vmem:[%s234 + $0x4] sm:$0xf] %v454
          %463 = vst [vmem:[%s234 + $0x8] sm:$0xf] %v457
        $region44: #{tpu_custom_call.1} parent=27 // pred_fallthru
          _
        %s464 = sand.u32 %s111, 1
        %s465 = scalar_lea.sflag [#allocation5], %s464
        %s466 = sand.u32 %s111, 1
        %s467 = smul.addr %s466, 12
        %s468 = scalar_lea.vmem [#allocation8], %s467
        // Predicated region
        $region45: #{tpu_custom_call.1} parent=27 // pred_check
          %p469 = pneg %p121
        $region46: #{tpu_custom_call.1} parent=27 // pred_check_branch
          %471 = sbr.rel (%p469) target = $region48
        $region47: #{tpu_custom_call.1} parent=27 // pred_region
          %s473 = ssub.s32 192, 192
          %474 = vsyncadd %s465, %s473
          %s475 = smul.addr %s28, 3
          %s476 = smul.addr %s27, 3
          %s477 = sadd.s32 %s475, %s476
          %s478 = smul.addr %s477, 64
          %s479 = scalar_lea.hbm %s2, %s478
          %s480 = sshll.u32 %s468, 4
          %s481 = int_to_ptr.vmem [resolvable:$true] %s480
          %486 = dma.vmem_to_hbm [thread:$0]  %s481, 192, %s479, %s465, 64, 64, 4
        $region48: #{tpu_custom_call.1} parent=27 // pred_fallthru
          _
      $region28: #{tpu_custom_call.1} parent=5 // pred_fallthru
        _
      %p487 = scmp.le.s32.totalorder 2, %s17
      // Predicated region
      $region49: #{tpu_custom_call.1} parent=5 // pred_check
        %p488 = pneg %p487
      $region50: #{tpu_custom_call.1} parent=5 // pred_check_branch
        %490 = sbr.rel (%p488) target = $region52
      $region51: #{tpu_custom_call.1} parent=5 // pred_region
        %s491 = ssub.s32 %s17, 2
        // Predicated region
        $region53: #{tpu_custom_call.1} parent=51 // pred_check
          %p492 = pneg %p127
        $region54: #{tpu_custom_call.1} parent=51 // pred_check_branch
          %494 = sbr.rel (%p492) target = $region56
        $region55: #{tpu_custom_call.1} parent=51 // pred_region
          %s495 = sand.u32 %s112, 1
          %s496 = scalar_lea.sflag [#allocation5], %s495
          %s497 = sand.u32 %s112, 1
          %s498 = smul.addr %s497, 12
          %s499 = scalar_lea.vmem [#allocation8], %s498
          %500 = dma.done %s496, 192
        $region56: #{tpu_custom_call.1} parent=51 // pred_fallthru
          _
      $region52: #{tpu_custom_call.1} parent=5 // pred_fallthru
        _
    $region6: #{tpu_custom_call.1} parent=1 // loop_footer
      %s21 = sadd.s32 1, %s17
    $region7: #{tpu_custom_call.1} parent=1 // loop_footer_branch
      %16 = sbr.rel target = $region3
    $region8: #{tpu_custom_call.1} parent=1 // loop_exit
      _
    %501 = vsyncpa [#allocation4], 1
    %s502 = scalar_lea.sflag [#allocation4], 1
    %503 = vsyncpa %s502, 1
    %504 = vsyncpa [#allocation7], 1
    %s505 = scalar_lea.sflag [#allocation7], 1
    %506 = vsyncpa %s505, 1
    %507 = vsyncpa [#allocation5], 1
    %s508 = scalar_lea.sflag [#allocation5], 1
    %509 = vsyncpa %s508, 1

</llo_original>
